<compile_context>
chip_gen: v5e
topology: v5e:2x2
jax: 0.10.0
libtpu: 0.0.40
codegen_flags: <defaults>
</compile_context>

<pallas_src>
import jax
import jax.numpy as jnp
from jax.experimental import pallas as pl
from jax.experimental.pallas import tpu as pltpu

N_OBS = 8      # env.observation_space.shape[0] (synthetic small env)
HIDDEN = 256
N_OUT = 1
MAX_TB = 512   # batch-tile cap (per-step-overhead bound, not VMEM/compute bound)


def vnet_kernel(x_ref, w1_ref, b1_ref, w2_ref, b2_ref, w3_ref, b3_ref, o_ref):
    """Fused 3-layer MLP on one batch tile. Weights stay VMEM-resident."""
    f32 = jnp.float32
    x = x_ref[...]                                                        # (TB, n_obs) f32
    h1 = jnp.dot(x, w1_ref[...].astype(f32), preferred_element_type=f32) + b1_ref[...]
    h1 = jnp.maximum(h1, 0.0)                                             # ReLU
    h2 = jnp.dot(h1, w2_ref[...].astype(f32), preferred_element_type=f32) + b2_ref[...]
    h2 = jnp.maximum(h2, 0.0)                                             # ReLU
    v = jnp.dot(h2, w3_ref[...].astype(f32), preferred_element_type=f32) + b3_ref[...]
    o_ref[...] = v.astype(o_ref.dtype)                                    # (TB, 1)


def vnetwork_forward(x, params):
    """V(s) for a batch of observations. x: (B, n_obs) f32 -> (B, 1) f32."""
    w1, b1, w2, b2, w3, b3 = params
    B, n_obs = x.shape
    hidden = w1.shape[1]
    n_out = w3.shape[1]

    # Tile selection: as few grid steps as possible (dispatch bound).  One step
    # for B <= MAX_TB; otherwise MAX_TB-row tiles on a parallel batch axis
    # (megacore sharding on v7x).  Ragged batches are zero-padded to a tile
    # multiple in the wrapper and sliced back below.
    tb = B if B <= MAX_TB else MAX_TB
    num_steps = pl.cdiv(B, tb)
    b_padded = num_steps * tb
    if b_padded != B:
        x = jnp.pad(x, ((0, b_padded - B), (0, 0)))

    in_specs = [
        pl.BlockSpec((tb, n_obs), lambda i: (i, 0)),
        # Weights / biases: constant block index -> resident across grid steps.
        pl.BlockSpec((n_obs, hidden), lambda i: (0, 0)),
        pl.BlockSpec((1, hidden), lambda i: (0, 0)),
        pl.BlockSpec((hidden, hidden), lambda i: (0, 0)),
        pl.BlockSpec((1, hidden), lambda i: (0, 0)),
        pl.BlockSpec((hidden, n_out), lambda i: (0, 0)),
        pl.BlockSpec((1, n_out), lambda i: (0, 0)),
    ]
    out_spec = pl.BlockSpec((tb, n_out), lambda i: (i, 0))

    # Batch tiles are independent -> parallel (lets v7x split them across its
    # two TensorCores).  A single-step grid stays on one core.
    semantics = ("parallel",) if num_steps > 1 else ("arbitrary",)

    # Advisory cost so XLA can overlap this microsecond-scale call.
    flops = 2 * b_padded * (n_obs * hidden + hidden * hidden + hidden * n_out)
    param_bytes = sum(int(a.size) * a.dtype.itemsize for a in (w1, b1, w2, b2, w3, b3))
    io_bytes = int(x.size) * x.dtype.itemsize + b_padded * n_out * 4
    cost = pl.CostEstimate(flops=flops, transcendentals=0,
                           bytes_accessed=param_bytes + io_bytes)

    out = pl.pallas_call(
        vnet_kernel,
        out_shape=jax.ShapeDtypeStruct((b_padded, n_out), jnp.float32),
        grid=(num_steps,),
        in_specs=in_specs,
        out_specs=out_spec,
        compiler_params=pltpu.CompilerParams(dimension_semantics=semantics),
        cost_estimate=cost,
    )(x, w1, b1, w2, b2, w3, b3)

    return out[:B] if b_padded != B else out


def init_params(key, weights_dtype=jnp.bfloat16):
    """PyTorch Linear default init: U(-1/sqrt(fan_in), +1/sqrt(fan_in)).

    Weight matrices are stored in `weights_dtype` (bf16 by default, per the
    perf review: halves weight DMA and the VMEM-resident copy); biases stay
    f32 and all matmuls accumulate in f32.
    """
    k1, k2, k3, k4, k5, k6 = jax.random.split(key, 6)

    def uniform(k, shape, fan_in, dtype):
        bound = 1.0 / jnp.sqrt(jnp.float32(fan_in))
        return jax.random.uniform(k, shape, jnp.float32, -bound, bound).astype(dtype)

    w1 = uniform(k1, (N_OBS, HIDDEN), N_OBS, weights_dtype)
    b1 = uniform(k2, (1, HIDDEN), N_OBS, jnp.float32)
    w2 = uniform(k3, (HIDDEN, HIDDEN), HIDDEN, weights_dtype)
    b2 = uniform(k4, (1, HIDDEN), HIDDEN, jnp.float32)
    w3 = uniform(k5, (HIDDEN, N_OUT), HIDDEN, weights_dtype)
    b3 = uniform(k6, (1, N_OUT), HIDDEN, jnp.float32)
    return (w1, b1, w2, b2, w3, b3)


def reference_forward(x, params):
    """Pure-JAX reference using the same (bf16-stored) weights, f32 math."""
    w1, b1, w2, b2, w3, b3 = params
    f32 = jnp.float32
    h1 = jnp.maximum(jnp.dot(x, w1.astype(f32), preferred_element_type=f32) + b1, 0.0)
    h2 = jnp.maximum(jnp.dot(h1, w2.astype(f32), preferred_element_type=f32) + b2, 0.0)
    return jnp.dot(h2, w3.astype(f32), preferred_element_type=f32) + b3


if __name__ == "__main__":
    key = jax.random.PRNGKey(0)
    kx_small, kx_large, kp = jax.random.split(key, 3)
    params = init_params(kp)

    # Kernel and reference share the same bf16-stored weights; remaining
    # differences come only from MXU matmul pass-precision / accumulation
    # order, so the tolerance is relaxed to 1e-2 (per review guidance).
    TOL = dict(atol=1e-2, rtol=1e-2)

    # Small batch (RL action-selection / inference case): one grid step, tb=B.
    x_small = jax.random.normal(kx_small, (16, N_OBS), jnp.float32)
    out_small = jax.block_until_ready(vnetwork_forward(x_small, params))
    ref_small = reference_forward(x_small, params)
    assert out_small.shape == (16, N_OUT)
    assert jnp.allclose(out_small, ref_small, **TOL)

    # Ragged training batch: wrapper pads 640 -> 1024, two parallel 512-row tiles.
    x_large = jax.random.normal(kx_large, (640, N_OBS), jnp.float32)
    out_large = jax.block_until_ready(vnetwork_forward(x_large, params))
    ref_large = reference_forward(x_large, params)
    assert out_large.shape == (640, N_OUT)
    assert jnp.allclose(out_large, ref_large, **TOL)

    print("KERNEL_OK")
</pallas_src>

<mosaic_0001>
module attributes {stable_mosaic.version = 11 : i64} {
  func.func @vnet_kernel(%arg0: i32, %arg1: memref<16x8xf32, #tpu.memory_space<vmem>>, %arg2: memref<8x256xbf16, #tpu.memory_space<vmem>>, %arg3: memref<1x256xf32, #tpu.memory_space<vmem>>, %arg4: memref<256x256xbf16, #tpu.memory_space<vmem>>, %arg5: memref<1x256xf32, #tpu.memory_space<vmem>>, %arg6: memref<256x1xbf16, #tpu.memory_space<vmem>>, %arg7: memref<1x1xf32, #tpu.memory_space<vmem>>, %arg8: memref<16x1xf32, #tpu.memory_space<vmem>>) attributes {dimension_semantics = [#tpu.dimension_semantics<arbitrary>], iteration_bounds = array<i64: 1>, scalar_prefetch = 0 : i64, scratch_operands = 0 : i64, tpu.core_type = #tpu.core_type<tc>, window_params = [{transform_indices = @transform_0, window_bounds = array<i64: 16, 8>}, {pipeline_mode = #tpu.pipeline_mode<synchronous>, transform_indices = @transform_1, window_bounds = array<i64: 8, 256>}, {pipeline_mode = #tpu.pipeline_mode<synchronous>, transform_indices = @transform_2, window_bounds = array<i64: 1, 256>}, {pipeline_mode = #tpu.pipeline_mode<synchronous>, transform_indices = @transform_3, window_bounds = array<i64: 256, 256>}, {pipeline_mode = #tpu.pipeline_mode<synchronous>, transform_indices = @transform_4, window_bounds = array<i64: 1, 256>}, {pipeline_mode = #tpu.pipeline_mode<synchronous>, transform_indices = @transform_5, window_bounds = array<i64: 256, 1>}, {pipeline_mode = #tpu.pipeline_mode<synchronous>, transform_indices = @transform_6, window_bounds = array<i64: 1, 1>}, {transform_indices = @transform_7, window_bounds = array<i64: 16, 1>}]} {
    %c0 = arith.constant 0 : index
    %c0_0 = arith.constant 0 : index
    %0 = vector.load %arg1[%c0, %c0_0] : memref<16x8xf32, #tpu.memory_space<vmem>>, vector<16x8xf32>
    %c0_1 = arith.constant 0 : index
    %c0_2 = arith.constant 0 : index
    %1 = vector.load %arg2[%c0_1, %c0_2] : memref<8x256xbf16, #tpu.memory_space<vmem>>, vector<8x256xbf16>
    %2 = arith.extf %1 : vector<8x256xbf16> to vector<8x256xf32>
    %cst = arith.constant dense<0.000000e+00> : vector<16x256xf32>
    %3 = tpu.matmul %0, %2, %cst {dimension_numbers = #tpu.dot_dimension_numbers<[1], [0], [0], [1], [0, 0, 1, 1], [], []>} : vector<16x8xf32>, vector<8x256xf32>, vector<16x256xf32> -> vector<16x256xf32>
    %c0_3 = arith.constant 0 : index
    %c0_4 = arith.constant 0 : index
    %4 = vector.load %arg3[%c0_3, %c0_4] : memref<1x256xf32, #tpu.memory_space<vmem>>, vector<1x256xf32>
    %5 = vector.broadcast %4 : vector<1x256xf32> to vector<16x256xf32>
    %6 = arith.addf %3, %5 : vector<16x256xf32>
    %cst_5 = arith.constant 0.000000e+00 : f32
    %7 = vector.broadcast %cst_5 : f32 to vector<16x256xf32>
    %8 = arith.maximumf %6, %7 : vector<16x256xf32>
    %c0_6 = arith.constant 0 : index
    %c0_7 = arith.constant 0 : index
    %9 = vector.load %arg4[%c0_6, %c0_7] : memref<256x256xbf16, #tpu.memory_space<vmem>>, vector<256x256xbf16>
    %10 = arith.extf %9 : vector<256x256xbf16> to vector<256x256xf32>
    %cst_8 = arith.constant dense<0.000000e+00> : vector<16x256xf32>
    %11 = tpu.matmul %8, %10, %cst_8 {dimension_numbers = #tpu.dot_dimension_numbers<[1], [0], [0], [1], [0, 0, 1, 1], [], []>} : vector<16x256xf32>, vector<256x256xf32>, vector<16x256xf32> -> vector<16x256xf32>
    %c0_9 = arith.constant 0 : index
    %c0_10 = arith.constant 0 : index
    %12 = vector.load %arg5[%c0_9, %c0_10] : memref<1x256xf32, #tpu.memory_space<vmem>>, vector<1x256xf32>
    %13 = vector.broadcast %12 : vector<1x256xf32> to vector<16x256xf32>
    %14 = arith.addf %11, %13 : vector<16x256xf32>
    %cst_11 = arith.constant 0.000000e+00 : f32
    %15 = vector.broadcast %cst_11 : f32 to vector<16x256xf32>
    %16 = arith.maximumf %14, %15 : vector<16x256xf32>
    %c0_12 = arith.constant 0 : index
    %c0_13 = arith.constant 0 : index
    %17 = vector.load %arg6[%c0_12, %c0_13] : memref<256x1xbf16, #tpu.memory_space<vmem>>, vector<256x1xbf16>
    %18 = arith.extf %17 : vector<256x1xbf16> to vector<256x1xf32>
    %cst_14 = arith.constant dense<0.000000e+00> : vector<16x1xf32>
    %19 = tpu.matmul %16, %18, %cst_14 {dimension_numbers = #tpu.dot_dimension_numbers<[1], [0], [0], [1], [0, 0, 1, 1], [], []>} : vector<16x256xf32>, vector<256x1xf32>, vector<16x1xf32> -> vector<16x1xf32>
    %c0_15 = arith.constant 0 : index
    %c0_16 = arith.constant 0 : index
    %20 = vector.load %arg7[%c0_15, %c0_16] : memref<1x1xf32, #tpu.memory_space<vmem>>, vector<1x1xf32>
    %21 = vector.broadcast %20 : vector<1x1xf32> to vector<16x1xf32>
    %22 = arith.addf %19, %21 : vector<16x1xf32>
    %c0_17 = arith.constant 0 : index
    %c0_18 = arith.constant 0 : index
    %23 = vector.load %arg8[%c0_17, %c0_18] : memref<16x1xf32, #tpu.memory_space<vmem>>, vector<16x1xf32>
    tpu.vector_store %arg8[%c0_17, %c0_18], %22 {strides = array<i32>} : memref<16x1xf32, #tpu.memory_space<vmem>>, vector<16x1xf32>,
    return
  }
  func.func @transform_0(%arg0: i32) -> (i32, i32) {
    %c0_i32 = arith.constant 0 : i32
    %c0_i32_0 = arith.constant 0 : i32
    return %arg0, %c0_i32 : i32, i32
  }
  func.func @transform_1(%arg0: i32) -> (i32, i32) {
    %c0_i32 = arith.constant 0 : i32
    %c0_i32_0 = arith.constant 0 : i32
    %c0_i32_1 = arith.constant 0 : i32
    return %c0_i32, %c0_i32_0 : i32, i32
  }
  func.func @transform_2(%arg0: i32) -> (i32, i32) {
    %c0_i32 = arith.constant 0 : i32
    %c0_i32_0 = arith.constant 0 : i32
    %c0_i32_1 = arith.constant 0 : i32
    return %c0_i32, %c0_i32_0 : i32, i32
  }
  func.func @transform_3(%arg0: i32) -> (i32, i32) {
    %c0_i32 = arith.constant 0 : i32
    %c0_i32_0 = arith.constant 0 : i32
    %c0_i32_1 = arith.constant 0 : i32
    return %c0_i32, %c0_i32_0 : i32, i32
  }
  func.func @transform_4(%arg0: i32) -> (i32, i32) {
    %c0_i32 = arith.constant 0 : i32
    %c0_i32_0 = arith.constant 0 : i32
    %c0_i32_1 = arith.constant 0 : i32
    return %c0_i32, %c0_i32_0 : i32, i32
  }
  func.func @transform_5(%arg0: i32) -> (i32, i32) {
    %c0_i32 = arith.constant 0 : i32
    %c0_i32_0 = arith.constant 0 : i32
    %c0_i32_1 = arith.constant 0 : i32
    return %c0_i32, %c0_i32_0 : i32, i32
  }
  func.func @transform_6(%arg0: i32) -> (i32, i32) {
    %c0_i32 = arith.constant 0 : i32
    %c0_i32_0 = arith.constant 0 : i32
    %c0_i32_1 = arith.constant 0 : i32
    return %c0_i32, %c0_i32_0 : i32, i32
  }
  func.func @transform_7(%arg0: i32) -> (i32, i32) {
    %c0_i32 = arith.constant 0 : i32
    %c0_i32_0 = arith.constant 0 : i32
    return %arg0, %c0_i32 : i32, i32
  }
}

</mosaic_0001>

<llo_original>
// kernel: tpu_custom_call.1
$region0: #{tpu_custom_call.1}
  #allocation0 [shape = 'u32[]', space=smem, size = 0x4, offset = 0x4, fixed_abs, tag = 'smem constant byte address 0x4 - core index']
  #allocation1 [shape = 'u32[72,128]{1,0:T(1,128)}', space=vmem, size = 0x9000, scoped, tag = 'internal scratch']
  #allocation2 [shape = 'f32[1,1]{1,0:T(1,128)S(1)}', space=vmem, size = 0x200, scoped, tag = 'scoped memory for tpu_custom_call.1']
  %s0 = inlined_call_operand.vmem [shape: f32[16,8], index: 0, kind: input, shape index: {}]
  %s1 = inlined_call_operand.vmem [shape: bf16[8,256], index: 1, kind: input, shape index: {}]
  %s2 = inlined_call_operand.vmem [shape: f32[1,256], index: 2, kind: input, shape index: {}]
  %s3 = inlined_call_operand.hbm [shape: bf16[256,256], index: 3, kind: input, shape index: {}]
  %s4 = inlined_call_operand.vmem [shape: f32[1,256], index: 4, kind: input, shape index: {}]
  %s5 = inlined_call_operand.vmem [shape: bf16[256,1], index: 5, kind: input, shape index: {}]
  %s6 = inlined_call_operand.<no memory space> [shape: f32[1,1], index: 6, kind: input, shape index: {}]
  %s7 = inlined_call_operand.vmem [shape: f32[16,1], index: 7, kind: output, shape index: {}]
  %s8 = sld [smem:[#allocation0]]
  $region42: #{tpu_custom_call.1} parent=0
    _
  %s10 = ssub.s32 1, %s8
  %s11 = scalar_select 0, %s10, %s8
  %v12 = vstv %s6
  %13 = vst [vmem:[#allocation2] sm:$0x1] %v12
  $region1: #{tpu_custom_call.1} parent=0
    #allocation3 [shape = 'u8[131072]{0}', space=vmem, size = 0x20000, scoped, tag = 'input window, operand 3, single buffered']
    #allocation4 [shape = 's32[1]{0}', space=sflag, size = 0x4, scoped, tag = 'scoped memory for tpu_custom_call.1']
    %14 = vsyncpa [#allocation4], 0
    // Predicated region
    $region2: #{tpu_custom_call.1} parent=1 // pred_check
      _
    $region3: #{tpu_custom_call.1} parent=1 // pred_check_branch
      %16 = sbr.rel (0) target = $region5
    $region4: #{tpu_custom_call.1} parent=1 // pred_region
      _
    $region5: #{tpu_custom_call.1} parent=1 // pred_fallthru
      _
    // Predicated region
    $region6: #{tpu_custom_call.1} parent=1 // pred_check
      _
    $region7: #{tpu_custom_call.1} parent=1 // pred_check_branch
      %18 = sbr.rel (0) target = $region9
    $region8: #{tpu_custom_call.1} parent=1 // pred_region
      _
    $region9: #{tpu_custom_call.1} parent=1 // pred_fallthru
      _
    // Predicated region
    $region10: #{tpu_custom_call.1} parent=1 // pred_check
      _
    $region11: #{tpu_custom_call.1} parent=1 // pred_check_branch
      %20 = sbr.rel (0) target = $region13
    $region12: #{tpu_custom_call.1} parent=1 // pred_region
      _
    $region13: #{tpu_custom_call.1} parent=1 // pred_fallthru
      _
    // Predicated region
    $region14: #{tpu_custom_call.1} parent=1 // pred_check
      _
    $region15: #{tpu_custom_call.1} parent=1 // pred_check_branch
      %22 = sbr.rel (0) target = $region17
    $region16: #{tpu_custom_call.1} parent=1 // pred_region
      %24 = vsyncadd [#allocation4], 0
      %s25 = sshll.u32 %s3, 4
      %s26 = int_to_ptr.hbm [resolvable:$true] %s25
      %s27 = sshll.u32 [#allocation3], 4
      %s28 = int_to_ptr.vmem [resolvable:$true] %s27
      %33 = dma.hbm_to_vmem [thread:$0]  %s26, 4096, %s28, [#allocation4], 128, 128, 8
    $region17: #{tpu_custom_call.1} parent=1 // pred_fallthru
      _
    // Predicated region
    $region18: #{tpu_custom_call.1} parent=1 // pred_check
      _
    $region19: #{tpu_custom_call.1} parent=1 // pred_check_branch
      %35 = sbr.rel (0) target = $region21
    $region20: #{tpu_custom_call.1} parent=1 // pred_region
      _
    $region21: #{tpu_custom_call.1} parent=1 // pred_fallthru
      _
    // Predicated region
    $region22: #{tpu_custom_call.1} parent=1 // pred_check
      _
    $region23: #{tpu_custom_call.1} parent=1 // pred_check_branch
      %37 = sbr.rel (0) target = $region25
    $region24: #{tpu_custom_call.1} parent=1 // pred_region
      _
    $region25: #{tpu_custom_call.1} parent=1 // pred_fallthru
      _
    // Predicated region
    $region26: #{tpu_custom_call.1} parent=1 // pred_check
      _
    $region27: #{tpu_custom_call.1} parent=1 // pred_check_branch
      %39 = sbr.rel (0) target = $region29
    $region28: #{tpu_custom_call.1} parent=1 // pred_region
      _
    $region29: #{tpu_custom_call.1} parent=1 // pred_fallthru
      _
    // Predicated region
    $region30: #{tpu_custom_call.1} parent=1 // pred_check
      _
    $region31: #{tpu_custom_call.1} parent=1 // pred_check_branch
      %41 = sbr.rel (0) target = $region33
    $region32: #{tpu_custom_call.1} parent=1 // pred_region
      %43 = dma.done [#allocation4], 4096
    $region33: #{tpu_custom_call.1} parent=1 // pred_fallthru
      _
    %v44 = vld [vmem:[%s0] sm:$0xff]
    %v45 = vld [vmem:[%s0 + $0x8] sm:$0xff]
    %v46 = vld [vmem:[%s1] sm:$0xff]
    %v47 = vunpack.c.l.bf16 %v46
    %v48 = vunpack.c.h.bf16 %v46
    %v49 = vld [vmem:[%s2] sm:$0x3]
    %v51 = vperm.slane %v49, 0
    %v52 = vperm.slane %v49, 1
    %vm55 = vcmask 64512
    %v57 = vsel %vm55, %v44, 0
    %v60 = vsel %vm55, %v45, 0
    %62 = vmatpush.msra.mxu0 0.0
    %63 = vmatpush.msra.mxu0 0.0
    %64 = vmatpush.msra.mxu0 0.0
    %65 = vmatpush.msra.mxu0 0.0
    %66 = vmatpush.msra.mxu0 0.0
    %67 = vmatpush.msra.mxu0 0.0
    %68 = vmatpush.msra.mxu0 0.0
    %69 = vmatpush.msra.mxu0 0.0
    %70 = vmatpush.msra.mxu0 0.0
    %71 = vmatpush.msra.mxu0 0.0
    %72 = vmatpush.msra.mxu0 0.0
    %73 = vmatpush.msra.mxu0 0.0
    %74 = vmatpush.msra.mxu0 0.0
    %75 = vmatpush.msra.mxu0 0.0
    %76 = vmatpush.msra.mxu0 0.0
    %77 = vmatpush.msra.mxu0 %v47
    %78 = vmatmul.f32.gmra.mxu0 %v57
    %v79 = vpop.f32.mrf.mxu0
    %v80 = vadd.f32 %v51, %v79
    %81 = vmatmul.f32.gmra.mxu0 %v60
    %v82 = vpop.f32.mrf.mxu0
    %v83 = vadd.f32 %v51, %v82
    %84 = vdwg.mxu0
    %85 = vmatpush.msra.mxu0 0.0
    %86 = vmatpush.msra.mxu0 0.0
    %87 = vmatpush.msra.mxu0 0.0
    %88 = vmatpush.msra.mxu0 0.0
    %89 = vmatpush.msra.mxu0 0.0
    %90 = vmatpush.msra.mxu0 0.0
    %91 = vmatpush.msra.mxu0 0.0
    %92 = vmatpush.msra.mxu0 0.0
    %93 = vmatpush.msra.mxu0 0.0
    %94 = vmatpush.msra.mxu0 0.0
    %95 = vmatpush.msra.mxu0 0.0
    %96 = vmatpush.msra.mxu0 0.0
    %97 = vmatpush.msra.mxu0 0.0
    %98 = vmatpush.msra.mxu0 0.0
    %99 = vmatpush.msra.mxu0 0.0
    %100 = vmatpush.msra.mxu0 %v48
    %101 = vmatmul.f32.gmra.mxu0 %v57
    %v102 = vpop.f32.mrf.mxu0
    %v103 = vadd.f32 %v52, %v102
    %104 = vmatmul.f32.gmra.mxu0 %v60
    %v105 = vpop.f32.mrf.mxu0
    %v106 = vadd.f32 %v52, %v105
    %107 = vdwg.mxu0
    %v108 = vmax.f32 %v80, 0.0
    %v109 = vmax.f32 %v103, 0.0
    %v110 = vmax.f32 %v83, 0.0
    %v111 = vmax.f32 %v106, 0.0
    %v112 = vld [vmem:[#allocation3] sm:$0xff]
    %v113 = vld [vmem:[#allocation3 + $0x8] sm:$0xff]
    %v114 = vld [vmem:[#allocation3 + $0x10] sm:$0xff]
    %v115 = vld [vmem:[#allocation3 + $0x18] sm:$0xff]
    %v116 = vld [vmem:[#allocation3 + $0x20] sm:$0xff]
    %v117 = vld [vmem:[#allocation3 + $0x28] sm:$0xff]
    %v118 = vld [vmem:[#allocation3 + $0x30] sm:$0xff]
    %v119 = vld [vmem:[#allocation3 + $0x38] sm:$0xff]
    %v120 = vld [vmem:[#allocation3 + $0x40] sm:$0xff]
    %v121 = vld [vmem:[#allocation3 + $0x48] sm:$0xff]
    %v122 = vld [vmem:[#allocation3 + $0x50] sm:$0xff]
    %v123 = vld [vmem:[#allocation3 + $0x58] sm:$0xff]
    %v124 = vld [vmem:[#allocation3 + $0x60] sm:$0xff]
    %v125 = vld [vmem:[#allocation3 + $0x68] sm:$0xff]
    %v126 = vld [vmem:[#allocation3 + $0x70] sm:$0xff]
    %v127 = vld [vmem:[#allocation3 + $0x78] sm:$0xff]
    %v128 = vld [vmem:[#allocation3 + $0x80] sm:$0xff]
    %v129 = vld [vmem:[#allocation3 + $0x88] sm:$0xff]
    %v130 = vld [vmem:[#allocation3 + $0x90] sm:$0xff]
    %v131 = vld [vmem:[#allocation3 + $0x98] sm:$0xff]
    %v132 = vld [vmem:[#allocation3 + $0xa0] sm:$0xff]
    %v133 = vld [vmem:[#allocation3 + $0xa8] sm:$0xff]
    %v134 = vld [vmem:[#allocation3 + $0xb0] sm:$0xff]
    %v135 = vld [vmem:[#allocation3 + $0xb8] sm:$0xff]
    %v136 = vld [vmem:[#allocation3 + $0xc0] sm:$0xff]
    %v137 = vld [vmem:[#allocation3 + $0xc8] sm:$0xff]
    %v138 = vld [vmem:[#allocation3 + $0xd0] sm:$0xff]
    %v139 = vld [vmem:[#allocation3 + $0xd8] sm:$0xff]
    %v140 = vld [vmem:[#allocation3 + $0xe0] sm:$0xff]
    %v141 = vld [vmem:[#allocation3 + $0xe8] sm:$0xff]
    %v142 = vld [vmem:[#allocation3 + $0xf0] sm:$0xff]
    %v143 = vld [vmem:[#allocation3 + $0xf8] sm:$0xff]
    %v144 = vunpack.c.l.bf16 %v112
    %v145 = vunpack.c.h.bf16 %v112
    %v146 = vunpack.c.l.bf16 %v113
    %v147 = vunpack.c.h.bf16 %v113
    %v148 = vunpack.c.l.bf16 %v114
    %v149 = vunpack.c.h.bf16 %v114
    %v150 = vunpack.c.l.bf16 %v115
    %v151 = vunpack.c.h.bf16 %v115
    %v152 = vunpack.c.l.bf16 %v116
    %v153 = vunpack.c.h.bf16 %v116
    %v154 = vunpack.c.l.bf16 %v117
    %v155 = vunpack.c.h.bf16 %v117
    %v156 = vunpack.c.l.bf16 %v118
    %v157 = vunpack.c.h.bf16 %v118
    %v158 = vunpack.c.l.bf16 %v119
    %v159 = vunpack.c.h.bf16 %v119
    %v160 = vunpack.c.l.bf16 %v120
    %v161 = vunpack.c.h.bf16 %v120
    %v162 = vunpack.c.l.bf16 %v121
    %v163 = vunpack.c.h.bf16 %v121
    %v164 = vunpack.c.l.bf16 %v122
    %v165 = vunpack.c.h.bf16 %v122
    %v166 = vunpack.c.l.bf16 %v123
    %v167 = vunpack.c.h.bf16 %v123
    %v168 = vunpack.c.l.bf16 %v124
    %v169 = vunpack.c.h.bf16 %v124
    %v170 = vunpack.c.l.bf16 %v125
    %v171 = vunpack.c.h.bf16 %v125
    %v172 = vunpack.c.l.bf16 %v126
    %v173 = vunpack.c.h.bf16 %v126
    %v174 = vunpack.c.l.bf16 %v127
    %v175 = vunpack.c.h.bf16 %v127
    %v176 = vunpack.c.l.bf16 %v128
    %v177 = vunpack.c.h.bf16 %v128
    %v178 = vunpack.c.l.bf16 %v129
    %v179 = vunpack.c.h.bf16 %v129
    %v180 = vunpack.c.l.bf16 %v130
    %v181 = vunpack.c.h.bf16 %v130
    %v182 = vunpack.c.l.bf16 %v131
    %v183 = vunpack.c.h.bf16 %v131
    %v184 = vunpack.c.l.bf16 %v132
    %v185 = vunpack.c.h.bf16 %v132
    %v186 = vunpack.c.l.bf16 %v133
    %v187 = vunpack.c.h.bf16 %v133
    %v188 = vunpack.c.l.bf16 %v134
    %v189 = vunpack.c.h.bf16 %v134
    %v190 = vunpack.c.l.bf16 %v135
    %v191 = vunpack.c.h.bf16 %v135
    %v192 = vunpack.c.l.bf16 %v136
    %v193 = vunpack.c.h.bf16 %v136
    %v194 = vunpack.c.l.bf16 %v137
    %v195 = vunpack.c.h.bf16 %v137
    %v196 = vunpack.c.l.bf16 %v138
    %v197 = vunpack.c.h.bf16 %v138
    %v198 = vunpack.c.l.bf16 %v139
    %v199 = vunpack.c.h.bf16 %v139
    %v200 = vunpack.c.l.bf16 %v140
    %v201 = vunpack.c.h.bf16 %v140
    %v202 = vunpack.c.l.bf16 %v141
    %v203 = vunpack.c.h.bf16 %v141
    %v204 = vunpack.c.l.bf16 %v142
    %v205 = vunpack.c.h.bf16 %v142
    %v206 = vunpack.c.l.bf16 %v143
    %v207 = vunpack.c.h.bf16 %v143
    %v208 = vld [vmem:[%s4] sm:$0x3]
    %v210 = vperm.slane %v208, 0
    %v211 = vperm.slane %v208, 1
    %214 = vmatpush.msra.mxu0 %v174
    %215 = vmatpush.msra.mxu0 %v172
    %216 = vmatpush.msra.mxu0 %v170
    %217 = vmatpush.msra.mxu0 %v168
    %218 = vmatpush.msra.mxu0 %v166
    %219 = vmatpush.msra.mxu0 %v164
    %220 = vmatpush.msra.mxu0 %v162
    %221 = vmatpush.msra.mxu0 %v160
    %222 = vmatpush.msra.mxu0 %v158
    %223 = vmatpush.msra.mxu0 %v156
    %224 = vmatpush.msra.mxu0 %v154
    %225 = vmatpush.msra.mxu0 %v152
    %226 = vmatpush.msra.mxu0 %v150
    %227 = vmatpush.msra.mxu0 %v148
    %228 = vmatpush.msra.mxu0 %v146
    %229 = vmatpush.msra.mxu0 %v144
    %230 = vmatmul.f32.gmra.mxu0 %v108
    %v231 = vpop.f32.mrf.mxu0
    %v232 = vadd.f32 %v210, %v231
    %233 = vmatmul.f32.gmra.mxu0 %v110
    %v234 = vpop.f32.mrf.mxu0
    %v235 = vadd.f32 %v210, %v234
    %236 = vdwg.mxu0
    %237 = vmatpush.msra.mxu0 %v206
    %238 = vmatpush.msra.mxu0 %v204
    %239 = vmatpush.msra.mxu0 %v202
    %240 = vmatpush.msra.mxu0 %v200
    %241 = vmatpush.msra.mxu0 %v198
    %242 = vmatpush.msra.mxu0 %v196
    %243 = vmatpush.msra.mxu0 %v194
    %244 = vmatpush.msra.mxu0 %v192
    %245 = vmatpush.msra.mxu0 %v190
    %246 = vmatpush.msra.mxu0 %v188
    %247 = vmatpush.msra.mxu0 %v186
    %248 = vmatpush.msra.mxu0 %v184
    %249 = vmatpush.msra.mxu0 %v182
    %250 = vmatpush.msra.mxu0 %v180
    %251 = vmatpush.msra.mxu0 %v178
    %252 = vmatpush.msra.mxu0 %v176
    %253 = vmatmul.f32.gmra.mxu0 %v109
    %v254 = vpop.f32.mrf.mxu0
    %v255 = vadd.f32 %v232, %v254
    %256 = vmatmul.f32.gmra.mxu0 %v111
    %v257 = vpop.f32.mrf.mxu0
    %v258 = vadd.f32 %v235, %v257
    %259 = vdwg.mxu0
    %260 = vmatpush.msra.mxu0 %v175
    %261 = vmatpush.msra.mxu0 %v173
    %262 = vmatpush.msra.mxu0 %v171
    %263 = vmatpush.msra.mxu0 %v169
    %264 = vmatpush.msra.mxu0 %v167
    %265 = vmatpush.msra.mxu0 %v165
    %266 = vmatpush.msra.mxu0 %v163
    %267 = vmatpush.msra.mxu0 %v161
    %268 = vmatpush.msra.mxu0 %v159
    %269 = vmatpush.msra.mxu0 %v157
    %270 = vmatpush.msra.mxu0 %v155
    %271 = vmatpush.msra.mxu0 %v153
    %272 = vmatpush.msra.mxu0 %v151
    %273 = vmatpush.msra.mxu0 %v149
    %274 = vmatpush.msra.mxu0 %v147
    %275 = vmatpush.msra.mxu0 %v145
    %276 = vmatmul.f32.gmra.mxu0 %v108
    %v277 = vpop.f32.mrf.mxu0
    %v278 = vadd.f32 %v211, %v277
    %279 = vmatmul.f32.gmra.mxu0 %v110
    %v280 = vpop.f32.mrf.mxu0
    %v281 = vadd.f32 %v211, %v280
    %282 = vdwg.mxu0
    %283 = vmatpush.msra.mxu0 %v207
    %284 = vmatpush.msra.mxu0 %v205
    %285 = vmatpush.msra.mxu0 %v203
    %286 = vmatpush.msra.mxu0 %v201
    %287 = vmatpush.msra.mxu0 %v199
    %288 = vmatpush.msra.mxu0 %v197
    %289 = vmatpush.msra.mxu0 %v195
    %290 = vmatpush.msra.mxu0 %v193
    %291 = vmatpush.msra.mxu0 %v191
    %292 = vmatpush.msra.mxu0 %v189
    %293 = vmatpush.msra.mxu0 %v187
    %294 = vmatpush.msra.mxu0 %v185
    %295 = vmatpush.msra.mxu0 %v183
    %296 = vmatpush.msra.mxu0 %v181
    %297 = vmatpush.msra.mxu0 %v179
    %298 = vmatpush.msra.mxu0 %v177
    %299 = vmatmul.f32.gmra.mxu0 %v109
    %v300 = vpop.f32.mrf.mxu0
    %v301 = vadd.f32 %v278, %v300
    %302 = vmatmul.f32.gmra.mxu0 %v111
    %v303 = vpop.f32.mrf.mxu0
    %v304 = vadd.f32 %v281, %v303
    %305 = vdwg.mxu0
    %v306 = vmax.f32 %v255, 0.0
    %v307 = vmax.f32 %v301, 0.0
    %v308 = vmax.f32 %v258, 0.0
    %v309 = vmax.f32 %v304, 0.0
    %v310 = vld [vmem:[%s5] sm:$0xf]
    %v311 = vld [vmem:[%s5 + $0x4] sm:$0xf]
    %v312 = vld [vmem:[%s5 + $0x8] sm:$0xf]
    %v313 = vld [vmem:[%s5 + $0xc] sm:$0xf]
    %v314 = vld [vmem:[%s5 + $0x10] sm:$0xf]
    %v315 = vld [vmem:[%s5 + $0x14] sm:$0xf]
    %v316 = vld [vmem:[%s5 + $0x18] sm:$0xf]
    %v317 = vld [vmem:[%s5 + $0x1c] sm:$0xf]
    %v318 = vld [vmem:[%s5 + $0x20] sm:$0xf]
    %v319 = vld [vmem:[%s5 + $0x24] sm:$0xf]
    %v320 = vld [vmem:[%s5 + $0x28] sm:$0xf]
    %v321 = vld [vmem:[%s5 + $0x2c] sm:$0xf]
    %v322 = vld [vmem:[%s5 + $0x30] sm:$0xf]
    %v323 = vld [vmem:[%s5 + $0x34] sm:$0xf]
    %v324 = vld [vmem:[%s5 + $0x38] sm:$0xf]
    %v325 = vld [vmem:[%s5 + $0x3c] sm:$0xf]
    %v326 = vld [vmem:[%s5 + $0x40] sm:$0xf]
    %v327 = vld [vmem:[%s5 + $0x44] sm:$0xf]
    %v328 = vld [vmem:[%s5 + $0x48] sm:$0xf]
    %v329 = vld [vmem:[%s5 + $0x4c] sm:$0xf]
    %v330 = vld [vmem:[%s5 + $0x50] sm:$0xf]
    %v331 = vld [vmem:[%s5 + $0x54] sm:$0xf]
    %v332 = vld [vmem:[%s5 + $0x58] sm:$0xf]
    %v333 = vld [vmem:[%s5 + $0x5c] sm:$0xf]
    %v334 = vld [vmem:[%s5 + $0x60] sm:$0xf]
    %v335 = vld [vmem:[%s5 + $0x64] sm:$0xf]
    %v336 = vld [vmem:[%s5 + $0x68] sm:$0xf]
    %v337 = vld [vmem:[%s5 + $0x6c] sm:$0xf]
    %v338 = vld [vmem:[%s5 + $0x70] sm:$0xf]
    %v339 = vld [vmem:[%s5 + $0x74] sm:$0xf]
    %v340 = vld [vmem:[%s5 + $0x78] sm:$0xf]
    %v341 = vld [vmem:[%s5 + $0x7c] sm:$0xf]
    %v342 = vunpack.c.l.bf16 %v310
    %v343 = vunpack.c.l.bf16 %v311
    %v344 = vunpack.c.l.bf16 %v312
    %v345 = vunpack.c.l.bf16 %v313
    %v346 = vunpack.c.l.bf16 %v314
    %v347 = vunpack.c.l.bf16 %v315
    %v348 = vunpack.c.l.bf16 %v316
    %v349 = vunpack.c.l.bf16 %v317
    %v350 = vunpack.c.l.bf16 %v318
    %v351 = vunpack.c.l.bf16 %v319
    %v352 = vunpack.c.l.bf16 %v320
    %v353 = vunpack.c.l.bf16 %v321
    %v354 = vunpack.c.l.bf16 %v322
    %v355 = vunpack.c.l.bf16 %v323
    %v356 = vunpack.c.l.bf16 %v324
    %v357 = vunpack.c.l.bf16 %v325
    %v358 = vunpack.c.l.bf16 %v326
    %v359 = vunpack.c.l.bf16 %v327
    %v360 = vunpack.c.l.bf16 %v328
    %v361 = vunpack.c.l.bf16 %v329
    %v362 = vunpack.c.l.bf16 %v330
    %v363 = vunpack.c.l.bf16 %v331
    %v364 = vunpack.c.l.bf16 %v332
    %v365 = vunpack.c.l.bf16 %v333
    %v366 = vunpack.c.l.bf16 %v334
    %v367 = vunpack.c.l.bf16 %v335
    %v368 = vunpack.c.l.bf16 %v336
    %v369 = vunpack.c.l.bf16 %v337
    %v370 = vunpack.c.l.bf16 %v338
    %v371 = vunpack.c.l.bf16 %v339
    %v372 = vunpack.c.l.bf16 %v340
    %v373 = vunpack.c.l.bf16 %v341
    %v374 = vld [vmem:[#allocation2] sm:$0x1]
    %v376 = vperm.slane %v374, 0
    %378 = vmatpush.msra.mxu0 %v357
    %379 = vmatpush.msra.mxu0 %v356
    %380 = vmatpush.msra.mxu0 %v355
    %381 = vmatpush.msra.mxu0 %v354
    %382 = vmatpush.msra.mxu0 %v353
    %383 = vmatpush.msra.mxu0 %v352
    %384 = vmatpush.msra.mxu0 %v351
    %385 = vmatpush.msra.mxu0 %v350
    %386 = vmatpush.msra.mxu0 %v349
    %387 = vmatpush.msra.mxu0 %v348
    %388 = vmatpush.msra.mxu0 %v347
    %389 = vmatpush.msra.mxu0 %v346
    %390 = vmatpush.msra.mxu0 %v345
    %391 = vmatpush.msra.mxu0 %v344
    %392 = vmatpush.msra.mxu0 %v343
    %393 = vmatpush.msra.mxu0 %v342
    %394 = vmatmul.f32.gmra.mxu0 %v306
    %v395 = vpop.f32.mrf.mxu0
    %v396 = vadd.f32 %v376, %v395
    %397 = vmatmul.f32.gmra.mxu0 %v308
    %v398 = vpop.f32.mrf.mxu0
    %v399 = vadd.f32 %v376, %v398
    %400 = vdwg.mxu0
    %401 = vmatpush.msra.mxu0 %v373
    %402 = vmatpush.msra.mxu0 %v372
    %403 = vmatpush.msra.mxu0 %v371
    %404 = vmatpush.msra.mxu0 %v370
    %405 = vmatpush.msra.mxu0 %v369
    %406 = vmatpush.msra.mxu0 %v368
    %407 = vmatpush.msra.mxu0 %v367
    %408 = vmatpush.msra.mxu0 %v366
    %409 = vmatpush.msra.mxu0 %v365
    %410 = vmatpush.msra.mxu0 %v364
    %411 = vmatpush.msra.mxu0 %v363
    %412 = vmatpush.msra.mxu0 %v362
    %413 = vmatpush.msra.mxu0 %v361
    %414 = vmatpush.msra.mxu0 %v360
    %415 = vmatpush.msra.mxu0 %v359
    %416 = vmatpush.msra.mxu0 %v358
    %417 = vmatmul.f32.gmra.mxu0 %v307
    %v418 = vpop.f32.mrf.mxu0
    %v419 = vadd.f32 %v396, %v418
    %420 = vmatmul.f32.gmra.mxu0 %v309
    %v421 = vpop.f32.mrf.mxu0
    %v422 = vadd.f32 %v399, %v421
    %423 = vdwg.mxu0
    %vm424 = vcmask 7168
    %425 = vst.msk [vmem:[%s7] sm:$0xff] %vm424, %v419
    %426 = vst.msk [vmem:[%s7 + $0x8] sm:$0xff] %vm424, %v422
    // Predicated region
    $region34: #{tpu_custom_call.1} parent=1 // pred_check
      _
    $region35: #{tpu_custom_call.1} parent=1 // pred_check_branch
      %428 = sbr.rel (0) target = $region37
    $region36: #{tpu_custom_call.1} parent=1 // pred_region
      _
    $region37: #{tpu_custom_call.1} parent=1 // pred_fallthru
      _
    // Predicated region
    $region38: #{tpu_custom_call.1} parent=1 // pred_check
      _
    $region39: #{tpu_custom_call.1} parent=1 // pred_check_branch
      %430 = sbr.rel (0) target = $region41
    $region40: #{tpu_custom_call.1} parent=1 // pred_region
      _
    $region41: #{tpu_custom_call.1} parent=1 // pred_fallthru
      _
    %431 = vsyncpa [#allocation4], 1

</llo_original>
